<compile_context>
chip_gen: v7x
topology: tpu7x:2x2x1
jax: 0.10.0
libtpu: 0.0.40
codegen_flags: <defaults>
</compile_context>

<pallas_src>
import jax
import jax.numpy as jnp
from jax.experimental import pallas as pl
from jax.experimental.pallas import tpu as pltpu

KERNEL_SIZE = 4
STRIDE = 2
PADDING = 1

_LANE = 128


def _round_up(v, m):
    return -(-v // m) * m


def _avgpool1d_matmul_kernel(x_ref, p_ref, o_ref):
    # x_ref: (row_tile, L), p_ref: (L, L_out_pad), o_ref: (row_tile, L_out_pad)
    x = x_ref[...]
    p = p_ref[...]
    if x.dtype != p.dtype:          # only hit when 1/k is not exact in x.dtype
        x = x.astype(p.dtype)
    o_ref[...] = jnp.dot(x, p, preferred_element_type=jnp.float32).astype(o_ref.dtype)


def _pooling_matrix(l_in, l_out, l_out_pad, kernel_size, stride, padding, dtype):
    # P[j, i] = 1/k iff unpadded input position j is tap t = j - (i*stride - padding)
    # of output window i with t in [0, k) and i < l_out; otherwise 0.  Taps that
    # fall into the zero padding contribute nothing, but the divisor stays k
    # (count_include_pad=True).  Columns i >= l_out are all-zero lane padding.
    j = jnp.arange(l_in, dtype=jnp.int32)[:, None]
    i = jnp.arange(l_out_pad, dtype=jnp.int32)[None, :]
    t = j - (i * stride - padding)
    valid = (t >= 0) & (t < kernel_size) & (i < l_out)
    return jnp.where(valid, 1.0 / kernel_size, 0.0).astype(dtype)


def _choose_row_tile(rows, l_in, l_out_pad, x_itemsize, p_itemsize, out_itemsize):
    # Sublane packing: 8 rows per vreg tile for 4-byte, 16 for 2-byte dtypes.
    sub_align = 8 * max(1, 4 // x_itemsize)
    if rows <= sub_align:
        return rows  # full-extent block (allowed even if not 8-aligned)

    # Double-buffered x and out tiles + double-buffered P must fit well inside
    # the 32 MiB scoped-VMEM default (leaves headroom on v7x's 64 MiB physical).
    budget = 24 * 1024 * 1024
    fixed = 2 * l_in * l_out_pad * p_itemsize            # pooling matrix (x2 buffers)
    per_row = 2 * (l_in * x_itemsize + l_out_pad * out_itemsize)
    avail = max(budget - fixed, 2 * 1024 * 1024)
    tile = max(sub_align, avail // max(per_row, 1))

    # v7x megacore: keep at least 2 grid steps when the problem is big enough
    # to be worth splitting across the two TensorCores.
    if rows >= 8 * sub_align:
        tile = min(tile, _round_up((rows + 1) // 2, sub_align))

    tile = min(tile, rows)
    tile = max(sub_align, (tile // sub_align) * sub_align)
    return tile


def avg_pool1d_pallas(x, kernel_size=KERNEL_SIZE, stride=STRIDE, padding=PADDING):
    """x: (B, C, L) -> (B, C, L_out), matching torch.nn.functional.avg_pool1d."""
    b, c, l = x.shape
    l_out = (l + 2 * padding - kernel_size) // stride + 1
    assert l_out > 0, "invalid pooling configuration"

    rows = b * c
    x2d = x.reshape(rows, l)

    # Lane-dense output width.
    l_out_pad = _round_up(l_out, _LANE)

    # P dtype: keep the MXU operands in the input dtype when 1/k is exactly
    # representable there (power-of-two k), otherwise fall back to f32.
    k_pow2 = (kernel_size & (kernel_size - 1)) == 0
    if x.dtype == jnp.bfloat16 and k_pow2:
        p_dtype = jnp.bfloat16
    else:
        p_dtype = jnp.float32
    pool_mat = _pooling_matrix(l, l_out, l_out_pad, kernel_size, stride, padding, p_dtype)

    x_item = x.dtype.itemsize
    p_item = jnp.dtype(p_dtype).itemsize
    out_item = x_item

    row_tile = _choose_row_tile(rows, l, l_out_pad, x_item, p_item, out_item)
    grid = (pl.cdiv(rows, row_tile),)

    vmem_bytes = (2 * row_tile * l * x_item
                  + 2 * l * l_out_pad * p_item
                  + 2 * row_tile * l_out_pad * out_item)
    vmem_limit = min(max(vmem_bytes + (4 << 20), 32 << 20), 64 << 20)

    out2d = pl.pallas_call(
        _avgpool1d_matmul_kernel,
        out_shape=jax.ShapeDtypeStruct((rows, l_out_pad), x.dtype),
        grid=grid,
        in_specs=[
            pl.BlockSpec((row_tile, l), lambda i: (i, 0)),
            pl.BlockSpec((l, l_out_pad), lambda i: (0, 0)),
        ],
        out_specs=pl.BlockSpec((row_tile, l_out_pad), lambda i: (i, 0)),
        compiler_params=pltpu.CompilerParams(
            dimension_semantics=("parallel",),
            vmem_limit_bytes=vmem_limit,
        ),
        cost_estimate=pl.CostEstimate(
            flops=2 * rows * l * l_out_pad,                       # actual MXU work
            transcendentals=0,
            bytes_accessed=(rows * l * x_item
                            + l * l_out_pad * p_item
                            + rows * l_out_pad * out_item),
        ),
    )(x2d, pool_mat)

    if l_out_pad != l_out:
        out2d = out2d[:, :l_out]
    return out2d.reshape(b, c, l_out)


def _reference_avg_pool1d(x, kernel_size, stride, padding):
    # Pure-JAX reference (count_include_pad=True semantics).
    x_pad = jnp.pad(x, ((0, 0), (0, 0), (padding, padding)))
    l_out = (x.shape[-1] + 2 * padding - kernel_size) // stride + 1
    taps = [
        jax.lax.slice_in_dim(
            x_pad, t, t + (l_out - 1) * stride + 1, stride=stride, axis=-1
        )
        for t in range(kernel_size)
    ]
    return sum(taps) / kernel_size


if __name__ == "__main__":
    key = jax.random.PRNGKey(0)
    k_f32, k_bf16 = jax.random.split(key)

    # f32 path (shape implied by the module: (batch, channels, length)).
    B, C, L = 2, 4, 16
    x = jax.random.normal(k_f32, (B, C, L), dtype=jnp.float32)
    out = jax.block_until_ready(avg_pool1d_pallas(x, KERNEL_SIZE, STRIDE, PADDING))
    ref = _reference_avg_pool1d(x, KERNEL_SIZE, STRIDE, PADDING)
    assert out.shape == ref.shape, (out.shape, ref.shape)
    assert jnp.allclose(out, ref, atol=1e-5, rtol=1e-5), float(
        jnp.max(jnp.abs(out - ref))
    )

    # bf16 path (native bf16 MXU matmul, no in-kernel upcast).
    xb = jax.random.normal(k_bf16, (2, 8, 32), dtype=jnp.bfloat16)
    outb = jax.block_until_ready(avg_pool1d_pallas(xb, KERNEL_SIZE, STRIDE, PADDING))
    refb = _reference_avg_pool1d(xb.astype(jnp.float32), KERNEL_SIZE, STRIDE, PADDING)
    assert outb.shape == refb.shape, (outb.shape, refb.shape)
    assert jnp.allclose(outb.astype(jnp.float32), refb, atol=3e-2, rtol=3e-2), float(
        jnp.max(jnp.abs(outb.astype(jnp.float32) - refb))
    )

    print("KERNEL_OK")
</pallas_src>

<mosaic_0001>
module attributes {stable_mosaic.version = 11 : i64} {
  func.func @_avgpool1d_matmul_kernel(%arg0: i32, %arg1: memref<8x16xf32, #tpu.memory_space<vmem>>, %arg2: memref<16x128xf32, #tpu.memory_space<vmem>>, %arg3: memref<8x128xf32, #tpu.memory_space<vmem>>) attributes {dimension_semantics = [#tpu.dimension_semantics<parallel>], iteration_bounds = array<i64: 1>, scalar_prefetch = 0 : i64, scratch_operands = 0 : i64, tpu.core_type = #tpu.core_type<tc>, window_params = [{transform_indices = @transform_0, window_bounds = array<i64: 8, 16>}, {pipeline_mode = #tpu.pipeline_mode<synchronous>, transform_indices = @transform_1, window_bounds = array<i64: 16, 128>}, {transform_indices = @transform_2, window_bounds = array<i64: 8, 128>}]} {
    %c0 = arith.constant 0 : index
    %c0_0 = arith.constant 0 : index
    %0 = vector.load %arg1[%c0, %c0_0] : memref<8x16xf32, #tpu.memory_space<vmem>>, vector<8x16xf32>
    %c0_1 = arith.constant 0 : index
    %c0_2 = arith.constant 0 : index
    %1 = vector.load %arg2[%c0_1, %c0_2] : memref<16x128xf32, #tpu.memory_space<vmem>>, vector<16x128xf32>
    %cst = arith.constant dense<0.000000e+00> : vector<8x128xf32>
    %2 = tpu.matmul %0, %1, %cst {dimension_numbers = #tpu.dot_dimension_numbers<[1], [0], [0], [1], [0, 0, 1, 1], [], []>} : vector<8x16xf32>, vector<16x128xf32>, vector<8x128xf32> -> vector<8x128xf32>
    %c0_3 = arith.constant 0 : index
    %c0_4 = arith.constant 0 : index
    %3 = vector.load %arg3[%c0_3, %c0_4] : memref<8x128xf32, #tpu.memory_space<vmem>>, vector<8x128xf32>
    tpu.vector_store %arg3[%c0_3, %c0_4], %2 {strides = array<i32>} : memref<8x128xf32, #tpu.memory_space<vmem>>, vector<8x128xf32>,
    return
  }
  func.func @transform_0(%arg0: i32) -> (i32, i32) {
    %c0_i32 = arith.constant 0 : i32
    %c0_i32_0 = arith.constant 0 : i32
    return %arg0, %c0_i32 : i32, i32
  }
  func.func @transform_1(%arg0: i32) -> (i32, i32) {
    %c0_i32 = arith.constant 0 : i32
    %c0_i32_0 = arith.constant 0 : i32
    %c0_i32_1 = arith.constant 0 : i32
    return %c0_i32, %c0_i32_0 : i32, i32
  }
  func.func @transform_2(%arg0: i32) -> (i32, i32) {
    %c0_i32 = arith.constant 0 : i32
    %c0_i32_0 = arith.constant 0 : i32
    return %arg0, %c0_i32 : i32, i32
  }
}

</mosaic_0001>

<llo_original>
// kernel: tpu_custom_call.1
$region0: #{tpu_custom_call.1}
  #allocation0 [shape = 'u32[]', space=smem, size = 0x4, offset = 0x4, fixed_abs, tag = 'smem constant byte address 0x4 - core index']
  #allocation1 [shape = 'u32[144,128]{1,0:T(1,128)}', space=vmem, size = 0x12000, scoped, tag = 'internal scratch']
  %s0 = inlined_call_operand.hbm [shape: f32[8,16], index: 0, kind: input, shape index: {}]
  %s1 = inlined_call_operand.hbm [shape: f32[16,128], index: 1, kind: input, shape index: {}]
  %s2 = inlined_call_operand.hbm [shape: f32[8,128], index: 2, kind: output, shape index: {}]
  %s3 = sld [smem:[#allocation0]]
  $region26: #{tpu_custom_call.1} parent=0
    _
  %s5 = ssub.s32 1, %s3
  %s6 = scalar_select 0, %s5, %s3
  $region1: #{tpu_custom_call.1} parent=0
    #allocation2 [shape = 'u8[4096]{0}', space=vmem, size = 0x1000, scoped, tag = 'input window, operand 0, single buffered']
    #allocation3 [shape = 's32[1]{0}', space=sflag, size = 0x4, scoped, tag = 'scoped memory for tpu_custom_call.1']
    #allocation4 [shape = 's32[1]{0}', space=sflag, size = 0x4, scoped, tag = 'scoped memory for tpu_custom_call.1']
    #allocation5 [shape = 'u8[8192]{0}', space=vmem, size = 0x2000, scoped, tag = 'input window, operand 1, single buffered']
    #allocation6 [shape = 's32[1]{0}', space=sflag, size = 0x4, scoped, tag = 'scoped memory for tpu_custom_call.1']
    #allocation7 [shape = 'u8[4096]{0}', space=vmem, size = 0x1000, scoped, tag = 'output window, operand 0, single buffered']
    %7 = vsyncpa [#allocation3], 0
    %8 = vsyncpa [#allocation6], 0
    %9 = vsyncpa [#allocation4], 0
    // Predicated region
    $region2: #{tpu_custom_call.1} parent=1 // pred_check
      _
    $region3: #{tpu_custom_call.1} parent=1 // pred_check_branch
      %11 = sbr.rel (0) target = $region5
    $region4: #{tpu_custom_call.1} parent=1 // pred_region
      %s13 = ssub.s32 128, 128
      %14 = vsyncadd [#allocation3], %s13
      %s16 = sshll.u32 [#allocation2], 4
      %s17 = int_to_ptr.vmem [resolvable:$true] %s16
      %19 = dma.hbm_to_vmem [thread:$0]  %s0, 128, %s17, [#allocation3]
    $region5: #{tpu_custom_call.1} parent=1 // pred_fallthru
      _
    // Predicated region
    $region6: #{tpu_custom_call.1} parent=1 // pred_check
      _
    $region7: #{tpu_custom_call.1} parent=1 // pred_check_branch
      %21 = sbr.rel (0) target = $region9
    $region8: #{tpu_custom_call.1} parent=1 // pred_region
      %s23 = ssub.s32 256, 256
      %24 = vsyncadd [#allocation6], %s23
      %s25 = sshll.u32 [#allocation5], 4
      %s26 = int_to_ptr.vmem [resolvable:$true] %s25
      %31 = dma.hbm_to_vmem [thread:$0]  %s1, 256, %s26, [#allocation6], 128, 128, 8
    $region9: #{tpu_custom_call.1} parent=1 // pred_fallthru
      _
    // Predicated region
    $region10: #{tpu_custom_call.1} parent=1 // pred_check
      _
    $region11: #{tpu_custom_call.1} parent=1 // pred_check_branch
      %33 = sbr.rel (0) target = $region13
    $region12: #{tpu_custom_call.1} parent=1 // pred_region
      %34 = dma.done [#allocation3], 128
    $region13: #{tpu_custom_call.1} parent=1 // pred_fallthru
      _
    // Predicated region
    $region14: #{tpu_custom_call.1} parent=1 // pred_check
      _
    $region15: #{tpu_custom_call.1} parent=1 // pred_check_branch
      %36 = sbr.rel (0) target = $region17
    $region16: #{tpu_custom_call.1} parent=1 // pred_region
      %37 = dma.done [#allocation6], 256
    $region17: #{tpu_custom_call.1} parent=1 // pred_fallthru
      _
    %v38 = vld [vmem:[#allocation2] sm:$0xff]
    %v39 = vld [vmem:[#allocation5] sm:$0xff]
    %v40 = vld [vmem:[#allocation5 + $0x8] sm:$0xff]
    %vm41 = vcmask 130048
    %v43 = vsel %vm41, %v38, 0
    %45 = vmatprep.subr.mxu0 0.0
    %46 = vmatpush1.msra.mxu0 %v39
    %47 = vmatprep.subr.mxu0 0.0
    %48 = vmatpush1.msra.mxu0 %v40
    %49 = vmatprep.subr.mxu0 0.0
    %50 = vmatpush1.msra.mxu0 0.0
    %51 = vmatprep.subr.mxu0 0.0
    %52 = vmatpush1.msra.mxu0 0.0
    %53 = vmatprep.subr.mxu0 0.0
    %54 = vmatpush1.msra.mxu0 0.0
    %55 = vmatprep.subr.mxu0 0.0
    %56 = vmatpush1.msra.mxu0 0.0
    %57 = vmatprep.subr.mxu0 0.0
    %58 = vmatpush1.msra.mxu0 0.0
    %59 = vmatprep.subr.mxu0 0.0
    %60 = vmatpush1.msra.mxu0 0.0
    %61 = vmatprep.subr.mxu0 0.0
    %62 = vmatpush1.msra.mxu0 0.0
    %63 = vmatprep.subr.mxu0 0.0
    %64 = vmatpush1.msra.mxu0 0.0
    %65 = vmatprep.subr.mxu0 0.0
    %66 = vmatpush1.msra.mxu0 0.0
    %67 = vmatprep.subr.mxu0 0.0
    %68 = vmatpush1.msra.mxu0 0.0
    %69 = vmatprep.subr.mxu0 0.0
    %70 = vmatpush1.msra.mxu0 0.0
    %71 = vmatprep.subr.mxu0 0.0
    %72 = vmatpush1.msra.mxu0 0.0
    %73 = vmatprep.subr.mxu0 0.0
    %74 = vmatpush1.msra.mxu0 0.0
    %75 = vmatprep.subr.mxu0 0.0
    %76 = vmatpush1.msra.mxu0 0.0
    %77 = vmatprep.subr.mxu0 0.0
    %78 = vmatpush1.msra.mxu0 0.0
    %79 = vmatprep.subr.mxu0 0.0
    %80 = vmatpush1.msra.mxu0 0.0
    %81 = vmatprep.subr.mxu0 0.0
    %82 = vmatpush1.msra.mxu0 0.0
    %83 = vmatprep.subr.mxu0 0.0
    %84 = vmatpush1.msra.mxu0 0.0
    %85 = vmatprep.subr.mxu0 0.0
    %86 = vmatpush1.msra.mxu0 0.0
    %87 = vmatprep.subr.mxu0 0.0
    %88 = vmatpush1.msra.mxu0 0.0
    %89 = vmatprep.subr.mxu0 0.0
    %90 = vmatpush1.msra.mxu0 0.0
    %91 = vmatprep.subr.mxu0 0.0
    %92 = vmatpush1.msra.mxu0 0.0
    %93 = vmatprep.subr.mxu0 0.0
    %94 = vmatpush1.msra.mxu0 0.0
    %95 = vmatprep.subr.mxu0 0.0
    %96 = vmatpush1.msra.mxu0 0.0
    %97 = vmatprep.subr.mxu0 0.0
    %98 = vmatpush1.msra.mxu0 0.0
    %99 = vmatprep.subr.mxu0 0.0
    %100 = vmatpush1.msra.mxu0 0.0
    %101 = vmatprep.subr.mxu0 0.0
    %102 = vmatpush1.msra.mxu0 0.0
    %103 = vmatprep.subr.mxu0 0.0
    %104 = vmatpush1.msra.mxu0 0.0
    %105 = vmatprep.subr.mxu0 0.0
    %106 = vmatpush1.msra.mxu0 0.0
    %107 = vmatprep.subr.mxu0 0.0
    %108 = vmatpush1.msra.mxu0 0.0
    %109 = vmatprep.mubr.f32.mxu0 0.0
    %110 = vmatmul.mubr.f32.gmra.mrb[0].mxu0 %v43
    %v111 = vpop.f32.mrb[0].mxu0
    %v112 = vadd.f32 0.0, %v111
    %v113 = vpop.f32.mrb[0].mxu0
    %114 = vdwg.mxu0
    %115 = vst [vmem:[#allocation7] sm:$0xff] %v112
    // Predicated region
    $region18: #{tpu_custom_call.1} parent=1 // pred_check
      _
    $region19: #{tpu_custom_call.1} parent=1 // pred_check_branch
      %117 = sbr.rel (0) target = $region21
    $region20: #{tpu_custom_call.1} parent=1 // pred_region
      %s119 = ssub.s32 128, 128
      %120 = vsyncadd [#allocation4], %s119
      %s122 = sshll.u32 [#allocation7], 4
      %s123 = int_to_ptr.vmem [resolvable:$true] %s122
      %125 = dma.vmem_to_hbm [thread:$0]  %s123, 128, %s2, [#allocation4]
    $region21: #{tpu_custom_call.1} parent=1 // pred_fallthru
      _
    // Predicated region
    $region22: #{tpu_custom_call.1} parent=1 // pred_check
      _
    $region23: #{tpu_custom_call.1} parent=1 // pred_check_branch
      %127 = sbr.rel (0) target = $region25
    $region24: #{tpu_custom_call.1} parent=1 // pred_region
      %128 = dma.done [#allocation4], 128
    $region25: #{tpu_custom_call.1} parent=1 // pred_fallthru
      _
    %129 = vsyncpa [#allocation3], 1
    %130 = vsyncpa [#allocation6], 1
    %131 = vsyncpa [#allocation4], 1

</llo_original>
